<compile_context>
chip_gen: v5e
topology: v5e:2x2
jax: 0.10.0
libtpu: 0.0.40
codegen_flags: <defaults>
</compile_context>

<pallas_src>
import functools
import math

import jax
import jax.numpy as jnp
from jax.experimental import pallas as pl
from jax.experimental.pallas import tpu as pltpu


def _make_divisible(v, divisor, min_value=None):
    if min_value is None:
        min_value = divisor
    new_v = max(min_value, int(v + divisor / 2) // divisor * divisor)
    if new_v < 0.9 * v:
        new_v += divisor
    return new_v


def _round_up(x, m):
    return ((x + m - 1) // m) * m


def _tpu_topology():
    """(tensorcores_per_chip, physical_vmem_bytes) with conservative fallbacks."""
    cores, vmem_cap = 1, 64 * 1024 * 1024          # safe defaults for every gen
    try:
        info = pltpu.get_tpu_info()
        for name in ("vmem_capacity_bytes", "vmem_bytes", "vmem_size_bytes"):
            v = getattr(info, name, None)
            if isinstance(v, int) and v > 0:
                vmem_cap = v
                break
        for name in ("num_cores", "tensorcores_per_chip", "num_tensorcores",
                     "cores_per_chip"):
            v = getattr(info, name, None)
            if isinstance(v, int) and v > 0:
                cores = v
                break
    except Exception:  # pragma: no cover - hardware query is best-effort only
        pass
    vmem_cap = max(vmem_cap, 64 * 1024 * 1024)
    return cores, vmem_cap


def _choose_block_batch(B, per_batch_bytes, target_bytes, num_cores):
    """Largest TB with block ~ target_bytes and TB | B.  On multi-TC chips keep
    >= 2 grid steps (prefer an even count) so the batch axis shards across
    TensorCores; on single-TC chips just take the biggest block."""
    tb = max(1, min(B, target_bytes // max(per_batch_bytes, 1)))
    if num_cores >= 2 and B >= 2:
        tb = min(tb, max(B // 2, 1))
    while B % tb != 0:
        tb -= 1
    if num_cores >= 2 and B >= 2 and (B // tb) % 2 != 0:
        t = tb - 1
        while t >= 1:
            if B % t == 0 and (B // t) % 2 == 0:
                tb = t
                break
            t -= 1
    return tb


def _se_kernel(x_ref, w1t_ref, b1_ref, w2t_ref, b2_ref, o_ref, *, inv_hw):
    # --- Squeeze: spatial mean.  Padded lanes are zero so the sum is exact;
    # divide by the true HW.  f32 accumulation; the converted block feeds only
    # the reduction (no f32 copy is kept live across the FC chain).
    mean = jnp.sum(x_ref[...].astype(jnp.float32), axis=-1) * inv_hw       # (TB, C)

    # --- Excite: batched FC1 + ReLU, FC2 + h_sigmoid (f32 accumulation).
    h = jnp.dot(mean, w1t_ref[...].astype(jnp.float32),
                preferred_element_type=jnp.float32) + b1_ref[...]          # (TB, hid)
    h = jnp.maximum(h, 0.0)
    s = jnp.dot(h, w2t_ref[...].astype(jnp.float32),
                preferred_element_type=jnp.float32) + b2_ref[...]          # (TB, C)
    s = jnp.clip(s + 3.0, 0.0, 6.0) * (1.0 / 6.0)                          # relu6(s+3)/6

    # --- Scale: re-read x in its native dtype and apply the gate in that
    # dtype (bf16 multiply for bf16 models; exact f32 path for f32 inputs).
    gate = s.astype(x_ref.dtype)[:, :, None]                               # (TB, C, 1)
    o_ref[...] = (x_ref[...] * gate).astype(o_ref.dtype)


def se_layer(x_nchw, w1, b1, w2, b2):
    """x_nchw: (B, C, H, W); w1: (hid, C); b1: (hid,); w2: (C, hid); b2: (C,).

    Output has the same shape and dtype as x_nchw.
    """
    B, C, H, W = x_nchw.shape
    hid = w1.shape[0]
    HW = H * W
    dtype = x_nchw.dtype
    itemsize = jnp.dtype(dtype).itemsize

    # Lane-dense layout: pad the spatial (lane) dim to a multiple of 128.
    HW_pad = _round_up(HW, 128)
    x_flat = x_nchw.reshape(B, C, HW)
    if HW_pad != HW:
        x_flat = jnp.pad(x_flat, ((0, 0), (0, 0), (0, HW_pad - HW)))

    # One-time weight prep: transposed weights, lane-dense (1, n) bias rows.
    # bf16 weight storage for bf16 activations; f32 kept on the strict path.
    wdtype = jnp.bfloat16 if dtype == jnp.bfloat16 else jnp.float32
    w1t = w1.astype(wdtype).T                          # (C, hid)
    w2t = w2.astype(wdtype).T                          # (hid, C)
    b1r = b1.astype(jnp.float32).reshape(1, hid)
    b2r = b2.astype(jnp.float32).reshape(1, C)

    num_cores, vmem_cap = _tpu_topology()
    # ~3 MiB padded blocks fit comfortably on v7x (64 MiB physical VMEM);
    # grow to ~6 MiB on 128 MiB parts (v5e / v6e) for better roofline.
    target_block_bytes = (6 << 20) if vmem_cap >= (96 << 20) else (3 << 20)

    c_pad = _round_up(C, 8)                            # sublane padding in VMEM
    per_batch_bytes = c_pad * HW_pad * itemsize        # padded footprint / batch
    TB = _choose_block_batch(B, per_batch_bytes, target_block_bytes, num_cores)
    grid = (B // TB,)

    # VMEM budget: double-buffered in + out blocks, the f32 reduction
    # temporary, double-buffered (padded) weights/biases, plus slack.
    block_bytes = TB * per_batch_bytes
    f32_temp_bytes = TB * c_pad * HW_pad * 4
    w_bytes = 2 * jnp.dtype(wdtype).itemsize * (
        c_pad * _round_up(hid, 128) + _round_up(hid, 8) * _round_up(C, 128))
    b_bytes = 2 * 4 * 8 * (_round_up(hid, 128) + _round_up(C, 128))
    est = 4 * block_bytes + f32_temp_bytes + w_bytes + b_bytes + (2 << 20)
    vmem_limit = int(min(max(2 * est, 32 << 20), (vmem_cap * 3) // 4))

    kernel = functools.partial(_se_kernel, inv_hw=1.0 / HW)

    out_flat = pl.pallas_call(
        kernel,
        out_shape=jax.ShapeDtypeStruct((B, C, HW_pad), dtype),
        grid_spec=pltpu.PrefetchScalarGridSpec(
            num_scalar_prefetch=0,
            grid=grid,
            in_specs=[
                pl.BlockSpec((TB, C, HW_pad), lambda i: (i, 0, 0)),   # x
                pl.BlockSpec((C, hid), lambda i: (0, 0)),             # W1^T
                pl.BlockSpec((1, hid), lambda i: (0, 0)),             # b1
                pl.BlockSpec((hid, C), lambda i: (0, 0)),             # W2^T
                pl.BlockSpec((1, C), lambda i: (0, 0)),               # b2
            ],
            out_specs=pl.BlockSpec((TB, C, HW_pad), lambda i: (i, 0, 0)),
        ),
        compiler_params=pltpu.CompilerParams(
            dimension_semantics=("parallel",),
            vmem_limit_bytes=vmem_limit,
        ),
    )(x_flat, w1t, b1r, w2t, b2r)

    if HW_pad != HW:
        out_flat = out_flat[:, :, :HW]
    return out_flat.reshape(B, C, H, W)


def _se_reference(x_nchw, w1, b1, w2, b2):
    # Pure-JAX (f32) reference matching the PyTorch forward.
    B, C, H, W = x_nchw.shape
    xf = x_nchw.astype(jnp.float32)
    y = jnp.mean(xf, axis=(2, 3))                      # (B, C)
    y = jnp.maximum(y @ w1.T + b1, 0.0)                # Linear + ReLU
    y = y @ w2.T + b2                                  # Linear
    y = jnp.clip(y + 3.0, 0.0, 6.0) / 6.0              # h_sigmoid
    return xf * y.reshape(B, C, 1, 1)


if __name__ == "__main__":
    key = jax.random.PRNGKey(0)

    def make_params(k, C, reduction=4):
        hid = _make_divisible(C // reduction, 8)
        k1, k2, k3, k4 = jax.random.split(k, 4)
        lim1 = 1.0 / math.sqrt(C)
        lim2 = 1.0 / math.sqrt(hid)
        w1 = jax.random.uniform(k1, (hid, C), minval=-lim1, maxval=lim1, dtype=jnp.float32)
        b1 = jax.random.uniform(k2, (hid,), minval=-lim1, maxval=lim1, dtype=jnp.float32)
        w2 = jax.random.uniform(k3, (C, hid), minval=-lim2, maxval=lim2, dtype=jnp.float32)
        b2 = jax.random.uniform(k4, (C,), minval=-lim2, maxval=lim2, dtype=jnp.float32)
        return w1, b1, w2, b2

    kx1, kp1, kx2, kp2, key = jax.random.split(key, 5)

    # Case 1: small SELayer, HW already a multiple of 128 (no padding path).
    B, C, H, W = 2, 4, 16, 16
    x = jax.random.normal(kx1, (B, C, H, W), dtype=jnp.float32)
    w1, b1, w2, b2 = make_params(kp1, C)

    out = jax.block_until_ready(se_layer(x, w1, b1, w2, b2))
    ref = _se_reference(x, w1, b1, w2, b2)
    assert out.shape == (B, C, H, W)
    assert out.dtype == jnp.float32
    assert jnp.allclose(out, ref, atol=1e-5, rtol=1e-5)

    # Case 1b: bf16 activations (dtype-preserving I/O, bf16 gate multiply,
    # bf16 weight storage).
    x_bf16 = x.astype(jnp.bfloat16)
    out_bf16 = jax.block_until_ready(se_layer(x_bf16, w1, b1, w2, b2))
    ref_bf16 = _se_reference(x_bf16.astype(jnp.float32), w1, b1, w2, b2)
    assert out_bf16.dtype == jnp.bfloat16
    assert jnp.allclose(out_bf16.astype(jnp.float32), ref_bf16, atol=5e-2, rtol=5e-2)

    # Case 2: realistic MobileNetV3 spatial size (HW = 49 -> exercises the
    # lane-padding path; the mean divides by the true HW, not the padded one).
    B2, C2, H2, W2 = 2, 16, 7, 7
    x2 = jax.random.normal(kx2, (B2, C2, H2, W2), dtype=jnp.float32)
    w1b, b1b, w2b, b2b = make_params(kp2, C2)
    out2 = jax.block_until_ready(se_layer(x2, w1b, b1b, w2b, b2b))
    ref2 = _se_reference(x2, w1b, b1b, w2b, b2b)
    assert out2.shape == (B2, C2, H2, W2)
    assert jnp.allclose(out2, ref2, atol=1e-5, rtol=1e-5)

    print("KERNEL_OK")
</pallas_src>

<mosaic_0001>
module attributes {stable_mosaic.version = 11 : i64} {
  func.func @_se_kernel(%arg0: i32, %arg1: memref<2x4x256xf32, #tpu.memory_space<vmem>>, %arg2: memref<4x8xf32, #tpu.memory_space<vmem>>, %arg3: memref<1x8xf32, #tpu.memory_space<vmem>>, %arg4: memref<8x4xf32, #tpu.memory_space<vmem>>, %arg5: memref<1x4xf32, #tpu.memory_space<vmem>>, %arg6: memref<2x4x256xf32, #tpu.memory_space<vmem>>) attributes {dimension_semantics = [#tpu.dimension_semantics<parallel>], iteration_bounds = array<i64: 1>, scalar_prefetch = 0 : i64, scratch_operands = 0 : i64, tpu.core_type = #tpu.core_type<tc>, window_params = [{transform_indices = @transform_0, window_bounds = array<i64: 2, 4, 256>}, {pipeline_mode = #tpu.pipeline_mode<synchronous>, transform_indices = @transform_1, window_bounds = array<i64: 4, 8>}, {pipeline_mode = #tpu.pipeline_mode<synchronous>, transform_indices = @transform_2, window_bounds = array<i64: 1, 8>}, {pipeline_mode = #tpu.pipeline_mode<synchronous>, transform_indices = @transform_3, window_bounds = array<i64: 8, 4>}, {pipeline_mode = #tpu.pipeline_mode<synchronous>, transform_indices = @transform_4, window_bounds = array<i64: 1, 4>}, {transform_indices = @transform_5, window_bounds = array<i64: 2, 4, 256>}]} {
    %c0 = arith.constant 0 : index
    %c0_0 = arith.constant 0 : index
    %c0_1 = arith.constant 0 : index
    %0 = vector.load %arg1[%c0, %c0_0, %c0_1] : memref<2x4x256xf32, #tpu.memory_space<vmem>>, vector<2x4x256xf32>
    %cst = arith.constant dense<0.000000e+00> : vector<2x4xf32>
    %1 = vector.multi_reduction <add>, %0, %cst [2] : vector<2x4x256xf32> to vector<2x4xf32>
    %cst_2 = arith.constant 3.906250e-03 : f32
    %2 = vector.broadcast %cst_2 : f32 to vector<2x4xf32>
    %3 = arith.mulf %1, %2 : vector<2x4xf32>
    %c0_3 = arith.constant 0 : index
    %c0_4 = arith.constant 0 : index
    %4 = vector.load %arg2[%c0_3, %c0_4] : memref<4x8xf32, #tpu.memory_space<vmem>>, vector<4x8xf32>
    %cst_5 = arith.constant dense<0.000000e+00> : vector<2x8xf32>
    %5 = tpu.matmul %3, %4, %cst_5 {dimension_numbers = #tpu.dot_dimension_numbers<[1], [0], [0], [1], [0, 0, 1, 1], [], []>} : vector<2x4xf32>, vector<4x8xf32>, vector<2x8xf32> -> vector<2x8xf32>
    %c0_6 = arith.constant 0 : index
    %c0_7 = arith.constant 0 : index
    %6 = vector.load %arg3[%c0_6, %c0_7] : memref<1x8xf32, #tpu.memory_space<vmem>>, vector<1x8xf32>
    %7 = vector.broadcast %6 : vector<1x8xf32> to vector<2x8xf32>
    %8 = arith.addf %5, %7 : vector<2x8xf32>
    %cst_8 = arith.constant 0.000000e+00 : f32
    %9 = vector.broadcast %cst_8 : f32 to vector<2x8xf32>
    %10 = arith.maximumf %8, %9 : vector<2x8xf32>
    %c0_9 = arith.constant 0 : index
    %c0_10 = arith.constant 0 : index
    %11 = vector.load %arg4[%c0_9, %c0_10] : memref<8x4xf32, #tpu.memory_space<vmem>>, vector<8x4xf32>
    %cst_11 = arith.constant dense<0.000000e+00> : vector<2x4xf32>
    %12 = tpu.matmul %10, %11, %cst_11 {dimension_numbers = #tpu.dot_dimension_numbers<[1], [0], [0], [1], [0, 0, 1, 1], [], []>} : vector<2x8xf32>, vector<8x4xf32>, vector<2x4xf32> -> vector<2x4xf32>
    %c0_12 = arith.constant 0 : index
    %c0_13 = arith.constant 0 : index
    %13 = vector.load %arg5[%c0_12, %c0_13] : memref<1x4xf32, #tpu.memory_space<vmem>>, vector<1x4xf32>
    %14 = vector.broadcast %13 : vector<1x4xf32> to vector<2x4xf32>
    %15 = arith.addf %12, %14 : vector<2x4xf32>
    %cst_14 = arith.constant 3.000000e+00 : f32
    %16 = vector.broadcast %cst_14 : f32 to vector<2x4xf32>
    %17 = arith.addf %15, %16 : vector<2x4xf32>
    %cst_15 = arith.constant 0.000000e+00 : f32
    %cst_16 = arith.constant 6.000000e+00 : f32
    %18 = vector.broadcast %cst_15 : f32 to vector<2x4xf32>
    %19 = arith.maximumf %18, %17 : vector<2x4xf32>
    %20 = vector.broadcast %cst_16 : f32 to vector<2x4xf32>
    %21 = arith.minimumf %20, %19 : vector<2x4xf32>
    %cst_17 = arith.constant 0.166666672 : f32
    %22 = vector.broadcast %cst_17 : f32 to vector<2x4xf32>
    %23 = arith.mulf %21, %22 : vector<2x4xf32>
    %24 = vector.shape_cast %23 : vector<2x4xf32> to vector<2x4x1xf32>
    %c0_18 = arith.constant 0 : index
    %c0_19 = arith.constant 0 : index
    %c0_20 = arith.constant 0 : index
    %25 = vector.load %arg1[%c0_18, %c0_19, %c0_20] : memref<2x4x256xf32, #tpu.memory_space<vmem>>, vector<2x4x256xf32>
    %26 = vector.broadcast %24 : vector<2x4x1xf32> to vector<2x4x256xf32>
    %27 = arith.mulf %25, %26 : vector<2x4x256xf32>
    %c0_21 = arith.constant 0 : index
    %c0_22 = arith.constant 0 : index
    %c0_23 = arith.constant 0 : index
    %28 = vector.load %arg6[%c0_21, %c0_22, %c0_23] : memref<2x4x256xf32, #tpu.memory_space<vmem>>, vector<2x4x256xf32>
    tpu.vector_store %arg6[%c0_21, %c0_22, %c0_23], %27 {strides = array<i32>} : memref<2x4x256xf32, #tpu.memory_space<vmem>>, vector<2x4x256xf32>,
    return
  }
  func.func @transform_0(%arg0: i32) -> (i32, i32, i32) {
    %c0_i32 = arith.constant 0 : i32
    %c0_i32_0 = arith.constant 0 : i32
    %c0_i32_1 = arith.constant 0 : i32
    return %arg0, %c0_i32, %c0_i32_0 : i32, i32, i32
  }
  func.func @transform_1(%arg0: i32) -> (i32, i32) {
    %c0_i32 = arith.constant 0 : i32
    %c0_i32_0 = arith.constant 0 : i32
    %c0_i32_1 = arith.constant 0 : i32
    return %c0_i32, %c0_i32_0 : i32, i32
  }
  func.func @transform_2(%arg0: i32) -> (i32, i32) {
    %c0_i32 = arith.constant 0 : i32
    %c0_i32_0 = arith.constant 0 : i32
    %c0_i32_1 = arith.constant 0 : i32
    return %c0_i32, %c0_i32_0 : i32, i32
  }
  func.func @transform_3(%arg0: i32) -> (i32, i32) {
    %c0_i32 = arith.constant 0 : i32
    %c0_i32_0 = arith.constant 0 : i32
    %c0_i32_1 = arith.constant 0 : i32
    return %c0_i32, %c0_i32_0 : i32, i32
  }
  func.func @transform_4(%arg0: i32) -> (i32, i32) {
    %c0_i32 = arith.constant 0 : i32
    %c0_i32_0 = arith.constant 0 : i32
    %c0_i32_1 = arith.constant 0 : i32
    return %c0_i32, %c0_i32_0 : i32, i32
  }
  func.func @transform_5(%arg0: i32) -> (i32, i32, i32) {
    %c0_i32 = arith.constant 0 : i32
    %c0_i32_0 = arith.constant 0 : i32
    %c0_i32_1 = arith.constant 0 : i32
    return %arg0, %c0_i32, %c0_i32_0 : i32, i32, i32
  }
}

</mosaic_0001>

<llo_original>
// kernel: tpu_custom_call.1
$region0: #{tpu_custom_call.1}
  #allocation0 [shape = 'u32[]', space=smem, size = 0x4, offset = 0x4, fixed_abs, tag = 'smem constant byte address 0x4 - core index']
  #allocation1 [shape = 'u32[72,128]{1,0:T(1,128)}', space=vmem, size = 0x9000, scoped, tag = 'internal scratch']
  %s0 = inlined_call_operand.hbm [shape: f32[2,4,256], index: 0, kind: input, shape index: {}]
  %s1 = inlined_call_operand.vmem [shape: f32[4,8], index: 1, kind: input, shape index: {}]
  %s2 = inlined_call_operand.vmem [shape: f32[1,8], index: 2, kind: input, shape index: {}]
  %s3 = inlined_call_operand.vmem [shape: f32[8,4], index: 3, kind: input, shape index: {}]
  %s4 = inlined_call_operand.vmem [shape: f32[1,4], index: 4, kind: input, shape index: {}]
  %s5 = inlined_call_operand.hbm [shape: f32[2,4,256], index: 5, kind: output, shape index: {}]
  %s6 = sld [smem:[#allocation0]]
  $region34: #{tpu_custom_call.1} parent=0
    _
  %s8 = ssub.s32 1, %s6
  %s9 = scalar_select 0, %s8, %s6
  $region1: #{tpu_custom_call.1} parent=0
    #allocation2 [shape = 'u8[8192]{0}', space=vmem, size = 0x2000, scoped, tag = 'input window, operand 0, single buffered']
    #allocation3 [shape = 's32[1]{0}', space=sflag, size = 0x4, scoped, tag = 'scoped memory for tpu_custom_call.1']
    #allocation4 [shape = 's32[1]{0}', space=sflag, size = 0x4, scoped, tag = 'scoped memory for tpu_custom_call.1']
    #allocation5 [shape = 'u8[8192]{0}', space=vmem, size = 0x2000, scoped, tag = 'output window, operand 0, single buffered']
    %10 = vsyncpa [#allocation3], 0
    %11 = vsyncpa [#allocation4], 0
    // Predicated region
    $region2: #{tpu_custom_call.1} parent=1 // pred_check
      _
    $region3: #{tpu_custom_call.1} parent=1 // pred_check_branch
      %13 = sbr.rel (0) target = $region5
    $region4: #{tpu_custom_call.1} parent=1 // pred_region
      %15 = vsyncadd [#allocation3], 0
      %s16 = sshll.u32 %s0, 4
      %s17 = int_to_ptr.hbm [resolvable:$true] %s16
      %s18 = sshll.u32 [#allocation2], 4
      %s19 = int_to_ptr.vmem [resolvable:$true] %s18
      %24 = dma.hbm_to_vmem [thread:$0]  %s17, 256, %s19, [#allocation3], 128, 128, 8
    $region5: #{tpu_custom_call.1} parent=1 // pred_fallthru
      _
    // Predicated region
    $region6: #{tpu_custom_call.1} parent=1 // pred_check
      _
    $region7: #{tpu_custom_call.1} parent=1 // pred_check_branch
      %26 = sbr.rel (0) target = $region9
    $region8: #{tpu_custom_call.1} parent=1 // pred_region
      _
    $region9: #{tpu_custom_call.1} parent=1 // pred_fallthru
      _
    // Predicated region
    $region10: #{tpu_custom_call.1} parent=1 // pred_check
      _
    $region11: #{tpu_custom_call.1} parent=1 // pred_check_branch
      %28 = sbr.rel (0) target = $region13
    $region12: #{tpu_custom_call.1} parent=1 // pred_region
      _
    $region13: #{tpu_custom_call.1} parent=1 // pred_fallthru
      _
    // Predicated region
    $region14: #{tpu_custom_call.1} parent=1 // pred_check
      _
    $region15: #{tpu_custom_call.1} parent=1 // pred_check_branch
      %30 = sbr.rel (0) target = $region17
    $region16: #{tpu_custom_call.1} parent=1 // pred_region
      _
    $region17: #{tpu_custom_call.1} parent=1 // pred_fallthru
      _
    // Predicated region
    $region18: #{tpu_custom_call.1} parent=1 // pred_check
      _
    $region19: #{tpu_custom_call.1} parent=1 // pred_check_branch
      %32 = sbr.rel (0) target = $region21
    $region20: #{tpu_custom_call.1} parent=1 // pred_region
      _
    $region21: #{tpu_custom_call.1} parent=1 // pred_fallthru
      _
    // Predicated region
    $region22: #{tpu_custom_call.1} parent=1 // pred_check
      _
    $region23: #{tpu_custom_call.1} parent=1 // pred_check_branch
      %34 = sbr.rel (0) target = $region25
    $region24: #{tpu_custom_call.1} parent=1 // pred_region
      %36 = dma.done [#allocation3], 256
    $region25: #{tpu_custom_call.1} parent=1 // pred_fallthru
      _
    %v37 = vld [vmem:[#allocation2] sm:$0xff]
    %v38 = vld [vmem:[#allocation2 + $0x8] sm:$0xff]
    %41 = vst [vmem:[#allocation1] ss:$2 sm:$0xff] %v37
    %v42 = vld.sshfl [vmem:[#allocation1] sm:$0xff pattern:$0x75316420]
    %v43 = vld.sshfl [vmem:[#allocation1 + $0x8] sm:$0xff pattern:$0x75316420]
    %s44 = scalar_lea.vmem [#allocation1], 16
    %45 = vst [vmem:[%s44] ss:$2 sm:$0xff] %v38
    %v46 = vld.sshfl [vmem:[#allocation1 + $0x10] sm:$0xff pattern:$0x75316420]
    %v47 = vld.sshfl [vmem:[#allocation1 + $0x18] sm:$0xff pattern:$0x75316420]
    %vm52 = vcmask 1043456
    %v53 = vsel %vm52, %v42, 0.0
    %v54 = vsel %vm52, %v43, 0.0
    %v55 = vadd.f32 %v53, %v54
    %56 = vadd.xlane.f32.xlu0 %v55
    %v57 = vpop.xlane.xlu0 %56
    %v58 = vsel %vm52, %v46, 0.0
    %v59 = vsel %vm52, %v47, 0.0
    %v60 = vadd.f32 %v58, %v59
    %61 = vadd.xlane.f32.xlu0 %v60
    %v62 = vpop.xlane.xlu0 %61
    %v63 = vmul.f32 %v57, 0.00390625
    %v64 = vmul.f32 %v62, 0.00390625
    %v65 = vld [vmem:[%s1] sm:$0xf]
    %v66 = vld [vmem:[%s2] sm:$0x1]
    %v68 = vperm.slane %v66, 0
    %v72 = vlaneseq
    %v73 = vand.u32 %v72, 127
    %v74 = vperm.slane %v63, %v73
    %v75 = vperm.slane %v64, %v73
    %vm76 = vcmask 1041409
    %v77 = vsel %vm76, %v75, %v74
    %vm78 = vcmask 31744
    %v79 = vsel %vm78, %v77, 0
    %v82 = vsel %vm52, %v65, 0
    %84 = vmatpush.msra.mxu0 0.0
    %85 = vmatpush.msra.mxu0 0.0
    %86 = vmatpush.msra.mxu0 0.0
    %87 = vmatpush.msra.mxu0 0.0
    %88 = vmatpush.msra.mxu0 0.0
    %89 = vmatpush.msra.mxu0 0.0
    %90 = vmatpush.msra.mxu0 0.0
    %91 = vmatpush.msra.mxu0 0.0
    %92 = vmatpush.msra.mxu0 0.0
    %93 = vmatpush.msra.mxu0 0.0
    %94 = vmatpush.msra.mxu0 0.0
    %95 = vmatpush.msra.mxu0 0.0
    %96 = vmatpush.msra.mxu0 0.0
    %97 = vmatpush.msra.mxu0 0.0
    %98 = vmatpush.msra.mxu0 0.0
    %99 = vmatpush.msra.mxu0 %v82
    %100 = vmatmul.f32.gmra.mxu0 %v79
    %v101 = vpop.f32.mrf.mxu0
    %v102 = vadd.f32 %v68, %v101
    %103 = vdwg.mxu0
    %v104 = vmax.f32 %v102, 0.0
    %v105 = vld [vmem:[%s3] sm:$0xff]
    %v106 = vld [vmem:[%s4] sm:$0x1]
    %v108 = vperm.slane %v106, 0
    %vm110 = vcmask 64512
    %v112 = vsel %vm110, %v104, 0
    %114 = vmatpush.msra.mxu0 0.0
    %115 = vmatpush.msra.mxu0 0.0
    %116 = vmatpush.msra.mxu0 0.0
    %117 = vmatpush.msra.mxu0 0.0
    %118 = vmatpush.msra.mxu0 0.0
    %119 = vmatpush.msra.mxu0 0.0
    %120 = vmatpush.msra.mxu0 0.0
    %121 = vmatpush.msra.mxu0 0.0
    %122 = vmatpush.msra.mxu0 0.0
    %123 = vmatpush.msra.mxu0 0.0
    %124 = vmatpush.msra.mxu0 0.0
    %125 = vmatpush.msra.mxu0 0.0
    %126 = vmatpush.msra.mxu0 0.0
    %127 = vmatpush.msra.mxu0 0.0
    %128 = vmatpush.msra.mxu0 0.0
    %129 = vmatpush.msra.mxu0 %v105
    %130 = vmatmul.f32.gmra.mxu0 %v112
    %v131 = vpop.f32.mrf.mxu0
    %v132 = vadd.f32 %v108, %v131
    %133 = vdwg.mxu0
    %v134 = vadd.f32 %v132, 3.0
    %v135 = vmax.f32 %v134, 0.0
    %v136 = vmin.f32 %v135, 6.0
    %v137 = vmul.f32 %v136, 0.16666667
    %v138 = vperm.slane %v137, 0
    %v139 = vlaneseq
    %v140 = vshrl.u32 %v139, 7
    %142 = vset.pattern.permute.xlu0 %v140
    %143 = vperm.xlu0 %142, %v138
    %v144 = vpop.permute.xlu0 %143
    %v145 = vperm.slane %v137, 1
    %v146 = vlaneseq
    %v147 = vshrl.u32 %v146, 7
    %149 = vset.pattern.permute.xlu0 %v147
    %150 = vperm.xlu0 %149, %v145
    %v151 = vpop.permute.xlu0 %150
    %v155 = vunpack.c.l.s4 839922192
    %v156 = vunpack.c.0.s8 %v155
    %v157 = vperm.slane %v144, %v156
    %v159 = vunpack.c.l.s4 839922192
    %v160 = vunpack.c.0.s8 %v159
    %v161 = vperm.slane %v151, %v160
    %v164 = vmul.f32 %v37, %v157
    %v165 = vmul.f32 %v38, %v161
    %166 = vst [vmem:[#allocation5] sm:$0xff] %v164
    %167 = vst [vmem:[#allocation5 + $0x8] sm:$0xff] %v165
    // Predicated region
    $region26: #{tpu_custom_call.1} parent=1 // pred_check
      _
    $region27: #{tpu_custom_call.1} parent=1 // pred_check_branch
      %169 = sbr.rel (0) target = $region29
    $region28: #{tpu_custom_call.1} parent=1 // pred_region
      %171 = vsyncadd [#allocation4], 0
      %s172 = sshll.u32 [#allocation5], 4
      %s173 = int_to_ptr.vmem [resolvable:$true] %s172
      %s174 = sshll.u32 %s5, 4
      %s175 = int_to_ptr.hbm [resolvable:$true] %s174
      %180 = dma.vmem_to_hbm [thread:$0]  %s173, 256, %s175, [#allocation4], 128, 128, 8
    $region29: #{tpu_custom_call.1} parent=1 // pred_fallthru
      _
    // Predicated region
    $region30: #{tpu_custom_call.1} parent=1 // pred_check
      _
    $region31: #{tpu_custom_call.1} parent=1 // pred_check_branch
      %182 = sbr.rel (0) target = $region33
    $region32: #{tpu_custom_call.1} parent=1 // pred_region
      %184 = dma.done [#allocation4], 256
    $region33: #{tpu_custom_call.1} parent=1 // pred_fallthru
      _
    %185 = vsyncpa [#allocation3], 1
    %186 = vsyncpa [#allocation4], 1

</llo_original>
